<compile_context>
chip_gen: v6e
topology: v6e:2x2x1
jax: 0.10.0
libtpu: 0.0.40
codegen_flags: <defaults>
</compile_context>

<pallas_src>
import functools

import jax
import jax.numpy as jnp
from jax.experimental import pallas as pl
from jax.experimental.pallas import tpu as pltpu


# ---------------------------------------------------------------------------
# Pallas kernel: (patch rows @ conv weights) + bias + ReLU, bf16 in / bf16 out
# ---------------------------------------------------------------------------

def _gemm_bias_relu_kernel(p_ref, w_ref, b_ref, o_ref):
    # p: (TS, K)  bf16  normalized im2col patch rows for this tile (K = C*9)
    # w: (K, D)   bf16  conv weights (VMEM-resident across the whole grid)
    # b: (1, D)   f32   conv bias    (VMEM-resident across the whole grid)
    # o: (TS, D)  bf16
    # K = 36 is tiny for the MXU, but the kernel is memory-bound so MXU
    # efficiency is irrelevant; f32 accumulation keeps the reduction exact.
    acc = jnp.dot(p_ref[...], w_ref[...], preferred_element_type=jnp.float32)
    acc = acc + b_ref[...]
    o_ref[...] = jnp.maximum(acc, 0.0).astype(o_ref.dtype)


# ---------------------------------------------------------------------------
# Glue
# ---------------------------------------------------------------------------

_DIMNUMS = ("NCHW", "OIHW", "NHWC")  # patches come out channel-last: no transpose


def _im2col(img, stride):
    return jax.lax.conv_general_dilated_patches(
        img,
        filter_shape=(3, 3),
        window_strides=(stride, stride),
        padding=((1, 1), (1, 1)),
        dimension_numbers=_DIMNUMS,
    )


def _pick_ts(rows, cap=1024):
    """Row-tile size for the flattened (N*S) axis.

    Rules (per perf review): multiple of 16 (bf16 sublane packing) when
    tiling, >= 256 rows when the problem is big enough, and keep >= 2 grid
    steps whenever possible so both v7x TensorCores get work.
    """
    if rows <= cap:
        if rows >= 32 and rows % 32 == 0:
            return rows // 2          # two tiles -> both TCs busy
        return rows                   # single full-dim tile (any size is legal)
    # Largest divisor of `rows` that is a multiple of 16 and in [256, cap].
    for t in range(cap, 255, -16):
        if rows % t == 0:
            return t
    # No good divisor: use the cap; Pallas masks the ragged last tile
    # (out-of-bounds reads feed rows whose stores are dropped).
    return cap


@functools.partial(jax.jit, static_argnames=("stride", "ts_cap", "out_dtype"))
def backbone_forward(img, params, *, stride=2, ts_cap=1024,
                     out_dtype=jnp.bfloat16):
    """Backbone.forward: encoder(preprocessor(img)) -> (N, OH*OW, D)."""
    N, C, H, W = img.shape
    w, b = params["conv_w"], params["conv_b"]
    K, D = w.shape
    assert K == C * 9, (K, C)

    mean = params["mean"].astype(jnp.float32)
    inv_std = (1.0 / params["std"]).astype(jnp.float32)

    # Preprocessor: per-channel normalize + cast to bf16 in ONE fused XLA
    # elementwise pass over the (small) image.  The conv below then zero-pads
    # the *normalized* image, exactly matching the reference semantics at the
    # borders (no position-dependent bias needed).
    xn = ((img - mean[None, :, None, None]) * inv_std[None, :, None, None]
          ).astype(jnp.bfloat16)

    # im2col directly in (N, OH, OW, C*9) bf16; K stays unpadded.
    patches = _im2col(xn, stride)
    OH, OW = patches.shape[1], patches.shape[2]
    S = OH * OW

    # Flatten batch into the row axis: row-independent GEMM, free reshapes.
    R = N * S
    p = patches.reshape(R, K)
    wp = w.astype(jnp.bfloat16)
    bp = b.reshape(1, D).astype(jnp.float32)

    TS = _pick_ts(R, ts_cap)
    grid = (pl.cdiv(R, TS),)

    out = pl.pallas_call(
        _gemm_bias_relu_kernel,
        out_shape=jax.ShapeDtypeStruct((R, D), out_dtype),
        grid=grid,
        in_specs=[
            # (TS, K): K == full array dim (36) -> full-dim exception, only
            # 72 B/row of HBM traffic for the dominant operand.
            pl.BlockSpec((TS, K), lambda r: (r, 0)),
            # Weights / bias: full-array blocks, fetched once, VMEM-resident.
            pl.BlockSpec((K, D), lambda r: (0, 0)),
            pl.BlockSpec((1, D), lambda r: (0, 0)),
        ],
        # Output last dim is the true D (full-dim block): no padded columns,
        # no post-kernel slice pass; bf16 store halves the largest HBM term.
        out_specs=pl.BlockSpec((TS, D), lambda r: (r, 0)),
        compiler_params=pltpu.CompilerParams(
            dimension_semantics=("parallel",)),
        cost_estimate=pl.CostEstimate(
            flops=2 * R * K * D,
            transcendentals=0,
            bytes_accessed=(R * K * 2 + K * D * 2 + D * 4
                            + R * D * jnp.dtype(out_dtype).itemsize)),
    )(p, wp, bp)

    return out.reshape(N, S, D)


def init_params(key, C, D, KH=3, KW=3):
    k_w, k_b = jax.random.split(key)
    fan_in = C * KH * KW
    conv_w = jax.random.normal(k_w, (fan_in, D), jnp.float32) / jnp.sqrt(fan_in)
    conv_b = jax.random.normal(k_b, (D,), jnp.float32) * 0.01
    mean = jnp.linspace(0.4, 0.5, C).astype(jnp.float32)
    std = jnp.linspace(0.2, 0.3, C).astype(jnp.float32)
    return {"conv_w": conv_w, "conv_b": conv_b, "mean": mean, "std": std}


def _reference(img, params, stride=2):
    """Pure-JAX f32 reference with the original semantics: normalize, then conv."""
    x = (img - params["mean"][None, :, None, None]) / params["std"][None, :, None, None]
    patches = _im2col(x, stride)                     # (N, OH, OW, K)
    n, oh, ow, k = patches.shape
    y = patches.reshape(n, oh * ow, k) @ params["conv_w"]
    y = y + params["conv_b"][None, None, :]
    return jnp.maximum(y, 0.0)


if __name__ == "__main__":
    key = jax.random.PRNGKey(0)
    k_img, k_par = jax.random.split(key)

    N, C, H, W = 2, 4, 16, 16
    D = 128  # representative SVTR embed dim; any D is supported (full-dim block)

    img = jax.random.normal(k_img, (N, C, H, W), jnp.float32)
    params = init_params(k_par, C, D)

    out = jax.block_until_ready(backbone_forward(img, params))

    OH = (H - 1) // 2 + 1
    OW = (W - 1) // 2 + 1
    assert out.shape == (N, OH * OW, D), out.shape
    assert out.dtype == jnp.bfloat16, out.dtype

    out_f32 = out.astype(jnp.float32)
    assert bool(jnp.all(jnp.isfinite(out_f32)))

    # Check against the unfused f32 reference.  The kernel path uses bf16
    # patches/weights and a bf16 output store (f32 accumulation), so allow a
    # few-percent relative tolerance on the 36-term dot products.
    ref = _reference(img, params)
    err = float(jnp.max(jnp.abs(out_f32 - ref)))
    tol = 0.03 * float(jnp.max(jnp.abs(ref))) + 0.1
    assert err < tol, (err, tol)

    print("KERNEL_OK")
</pallas_src>

<mosaic_0001>
module attributes {stable_mosaic.version = 11 : i64} {
  func.func @_gemm_bias_relu_kernel(%arg0: i32, %arg1: memref<64x36xbf16, #tpu.memory_space<vmem>>, %arg2: memref<36x128xbf16, #tpu.memory_space<vmem>>, %arg3: memref<1x128xf32, #tpu.memory_space<vmem>>, %arg4: memref<64x128xbf16, #tpu.memory_space<vmem>>) attributes {dimension_semantics = [#tpu.dimension_semantics<parallel>], iteration_bounds = array<i64: 2>, scalar_prefetch = 0 : i64, scratch_operands = 0 : i64, tpu.core_type = #tpu.core_type<tc>, window_params = [{transform_indices = @transform_0, window_bounds = array<i64: 64, 36>}, {pipeline_mode = #tpu.pipeline_mode<synchronous>, transform_indices = @transform_1, window_bounds = array<i64: 36, 128>}, {pipeline_mode = #tpu.pipeline_mode<synchronous>, transform_indices = @transform_2, window_bounds = array<i64: 1, 128>}, {transform_indices = @transform_3, window_bounds = array<i64: 64, 128>}]} {
    %c0 = arith.constant 0 : index
    %c0_0 = arith.constant 0 : index
    %0 = vector.load %arg1[%c0, %c0_0] : memref<64x36xbf16, #tpu.memory_space<vmem>>, vector<64x36xbf16>
    %c0_1 = arith.constant 0 : index
    %c0_2 = arith.constant 0 : index
    %1 = vector.load %arg2[%c0_1, %c0_2] : memref<36x128xbf16, #tpu.memory_space<vmem>>, vector<36x128xbf16>
    %cst = arith.constant dense<0.000000e+00> : vector<64x128xf32>
    %2 = tpu.matmul %0, %1, %cst {dimension_numbers = #tpu.dot_dimension_numbers<[1], [0], [0], [1], [0, 0, 1, 1], [], []>} : vector<64x36xbf16>, vector<36x128xbf16>, vector<64x128xf32> -> vector<64x128xf32>
    %c0_3 = arith.constant 0 : index
    %c0_4 = arith.constant 0 : index
    %3 = vector.load %arg3[%c0_3, %c0_4] : memref<1x128xf32, #tpu.memory_space<vmem>>, vector<1x128xf32>
    %4 = vector.broadcast %3 : vector<1x128xf32> to vector<64x128xf32>
    %5 = arith.addf %2, %4 : vector<64x128xf32>
    %cst_5 = arith.constant 0.000000e+00 : f32
    %6 = vector.broadcast %cst_5 : f32 to vector<64x128xf32>
    %7 = arith.maximumf %5, %6 : vector<64x128xf32>
    %8 = arith.truncf %7 : vector<64x128xf32> to vector<64x128xbf16>
    %c0_6 = arith.constant 0 : index
    %c0_7 = arith.constant 0 : index
    %9 = vector.load %arg4[%c0_6, %c0_7] : memref<64x128xbf16, #tpu.memory_space<vmem>>, vector<64x128xbf16>
    tpu.vector_store %arg4[%c0_6, %c0_7], %8 {strides = array<i32>} : memref<64x128xbf16, #tpu.memory_space<vmem>>, vector<64x128xbf16>,
    return
  }
  func.func @transform_0(%arg0: i32) -> (i32, i32) {
    %c0_i32 = arith.constant 0 : i32
    %c0_i32_0 = arith.constant 0 : i32
    return %arg0, %c0_i32 : i32, i32
  }
  func.func @transform_1(%arg0: i32) -> (i32, i32) {
    %c0_i32 = arith.constant 0 : i32
    %c0_i32_0 = arith.constant 0 : i32
    %c0_i32_1 = arith.constant 0 : i32
    return %c0_i32, %c0_i32_0 : i32, i32
  }
  func.func @transform_2(%arg0: i32) -> (i32, i32) {
    %c0_i32 = arith.constant 0 : i32
    %c0_i32_0 = arith.constant 0 : i32
    %c0_i32_1 = arith.constant 0 : i32
    return %c0_i32, %c0_i32_0 : i32, i32
  }
  func.func @transform_3(%arg0: i32) -> (i32, i32) {
    %c0_i32 = arith.constant 0 : i32
    %c0_i32_0 = arith.constant 0 : i32
    return %arg0, %c0_i32 : i32, i32
  }
}

</mosaic_0001>

<llo_original>
// kernel: backbone_forward.1
$region0: #{backbone_forward.1}
  #allocation0 [shape = 'u32[]', space=smem, size = 0x4, offset = 0x4, fixed_abs, tag = 'smem constant byte address 0x4 - core index']
  #allocation1 [shape = 'u32[144,128]{1,0:T(1,128)}', space=vmem, size = 0x12000, scoped, tag = 'internal scratch']
  %s0 = inlined_call_operand.vmem [shape: bf16[128,36], index: 0, kind: input, shape index: {}]
  %s1 = inlined_call_operand.vmem [shape: bf16[36,128], index: 1, kind: input, shape index: {}]
  %s2 = inlined_call_operand.vmem [shape: f32[1,128], index: 2, kind: input, shape index: {}]
  %s3 = inlined_call_operand.hbm [shape: bf16[128,128], index: 3, kind: output, shape index: {}]
  %s4 = sld [smem:[#allocation0]]
  $region45: #{backbone_forward.1} parent=0
    _
  %s6 = ssub.s32 1, %s4
  %s7 = scalar_select 0, %s6, %s4
  $region1: #{backbone_forward.1} parent=0
    #allocation2 [shape = 'u8[32768]{0}', space=vmem, size = 0x8000, scoped, tag = 'output window, operand 0']
    #allocation3 [shape = 's32[2]{0}', space=sflag, size = 0x8, scoped, tag = 'scoped memory for backbone_forward.1']
    %8 = vsyncpa [#allocation3], 0
    %s9 = scalar_lea.sflag [#allocation3], 1
    %10 = vsyncpa %s9, 0
    loop: start=0, step=1, limit=4
    $region2: #{backbone_forward.1} parent=1 // loop_pre_header
      _
    $region3: #{backbone_forward.1} parent=1 // loop_header
      %s12 = sphi 0, %s16
      %p13 = scmp.ge.s32.totalorder %s12, 4
      %s22 = sphi 0, %s24
      %s25 = sphi 0, %s22
      %s26 = sphi 0, %s25
      %s42 = sphi 0, %s26
      %s46 = sphi 0, %s46
      %s48 = sphi 0, %s46
      %s49 = sphi 0, %s48
      %s63 = sphi 0, %s49
      %s67 = sphi 0, %s67
      %s69 = sphi 0, %s67
      %s70 = sphi 0, %s69
      %s84 = sphi 0, %s70
      %s90 = sphi 0, %s92
      %s93 = sphi 0, %s90
      %s94 = sphi 0, %s93
      %s110 = sphi 0, %s94
    $region4: #{backbone_forward.1} parent=1 // loop_header_branch
      %15 = sbr.rel (%p13) target = $region8
    $region5: #{backbone_forward.1} parent=1 // loop_body
      %s17 = ssub.s32 %s12, 1
      %s18 = ssub.s32 %s12, 2
      %s19 = sadd.s32 %s12, 1
      %s20 = ssub.s32 %s12, %s19
      %p21 = scmp.eq.s32.totalorder %s20, 0
      %s23 = sadd.s32 %s22, 1
      %s24 = scalar_select %p21, %s22, %s23
      %p27 = pneg %p21
      %p28 = scmp.eq.s32.totalorder %s12, 1
      %p29 = por %p27, %p28
      %p30 = scmp.ne.s32.totalorder %s22, %s25
      %p31 = scmp.eq.s32.totalorder %s12, 0
      %p32 = por %p30, %p31
      %p33 = scmp.ne.s32.totalorder %s22, %s25
      %p34 = scmp.eq.s32.totalorder %s17, 1
      %p35 = por %p33, %p34
      %p36 = scmp.ne.s32.totalorder %s25, %s26
      %p37 = scmp.eq.s32.totalorder %s17, 0
      %p38 = por %p36, %p37
      %p39 = scmp.ne.s32.totalorder %s25, %s26
      %p40 = scmp.eq.s32.totalorder %s18, 1
      %p41 = por %p39, %p40
      %p43 = scmp.ne.s32.totalorder %s26, %s42
      %p44 = scmp.eq.s32.totalorder %s18, 0
      %p45 = por %p43, %p44
      %s47 = sadd.s32 %s46, 1
      %p50 = scmp.eq.s32.totalorder %s12, 1
      %p51 = scmp.ne.s32.totalorder %s46, %s48
      %p52 = scmp.eq.s32.totalorder %s12, 0
      %p53 = por %p51, %p52
      %p54 = scmp.ne.s32.totalorder %s46, %s48
      %p55 = scmp.eq.s32.totalorder %s17, 1
      %p56 = por %p54, %p55
      %p57 = scmp.ne.s32.totalorder %s48, %s49
      %p58 = scmp.eq.s32.totalorder %s17, 0
      %p59 = por %p57, %p58
      %p60 = scmp.ne.s32.totalorder %s48, %s49
      %p61 = scmp.eq.s32.totalorder %s18, 1
      %p62 = por %p60, %p61
      %p64 = scmp.ne.s32.totalorder %s49, %s63
      %p65 = scmp.eq.s32.totalorder %s18, 0
      %p66 = por %p64, %p65
      %s68 = sadd.s32 %s67, 1
      %p71 = scmp.eq.s32.totalorder %s12, 1
      %p72 = scmp.ne.s32.totalorder %s67, %s69
      %p73 = scmp.eq.s32.totalorder %s12, 0
      %p74 = por %p72, %p73
      %p75 = scmp.ne.s32.totalorder %s67, %s69
      %p76 = scmp.eq.s32.totalorder %s17, 1
      %p77 = por %p75, %p76
      %p78 = scmp.ne.s32.totalorder %s69, %s70
      %p79 = scmp.eq.s32.totalorder %s17, 0
      %p80 = por %p78, %p79
      %p81 = scmp.ne.s32.totalorder %s69, %s70
      %p82 = scmp.eq.s32.totalorder %s18, 1
      %p83 = por %p81, %p82
      %p85 = scmp.ne.s32.totalorder %s70, %s84
      %p86 = scmp.eq.s32.totalorder %s18, 0
      %p87 = por %p85, %p86
      %s88 = ssub.s32 %s12, %s19
      %p89 = scmp.eq.s32.totalorder %s88, 0
      %s91 = sadd.s32 %s90, 1
      %s92 = scalar_select %p89, %s90, %s91
      %p95 = pneg %p89
      %p96 = scmp.eq.s32.totalorder %s12, 1
      %p97 = por %p95, %p96
      %p98 = scmp.ne.s32.totalorder %s90, %s93
      %p99 = scmp.eq.s32.totalorder %s12, 0
      %p100 = por %p98, %p99
      %p101 = scmp.ne.s32.totalorder %s90, %s93
      %p102 = scmp.eq.s32.totalorder %s17, 1
      %p103 = por %p101, %p102
      %p104 = scmp.ne.s32.totalorder %s93, %s94
      %p105 = scmp.eq.s32.totalorder %s17, 0
      %p106 = por %p104, %p105
      %p107 = scmp.ne.s32.totalorder %s93, %s94
      %p108 = scmp.eq.s32.totalorder %s18, 1
      %p109 = por %p107, %p108
      %p111 = scmp.ne.s32.totalorder %s94, %s110
      %p112 = scmp.eq.s32.totalorder %s18, 0
      %p113 = por %p111, %p112
      %p114 = scmp.le.s32.totalorder 1, %s12
      %p115 = scmp.lt.s32.totalorder %s12, 3
      %p116 = pnand %p114, %p115
      %p117 = pneg %p116
      // Predicated region
      $region9: #{backbone_forward.1} parent=5 // pred_check
        _
      $region10: #{backbone_forward.1} parent=5 // pred_check_branch
        %119 = sbr.rel (%p116) target = $region12
      $region11: #{backbone_forward.1} parent=5 // pred_region
        %s120 = ssub.s32 %s12, 1
        // Predicated region
        $region13: #{backbone_forward.1} parent=11 // pred_check
          %p121 = pneg %p59
        $region14: #{backbone_forward.1} parent=11 // pred_check_branch
          %123 = sbr.rel (%p121) target = $region16
        $region15: #{backbone_forward.1} parent=11 // pred_region
          _
        $region16: #{backbone_forward.1} parent=11 // pred_fallthru
          _
        // Predicated region
        $region17: #{backbone_forward.1} parent=11 // pred_check
          %p124 = pneg %p80
        $region18: #{backbone_forward.1} parent=11 // pred_check_branch
          %126 = sbr.rel (%p124) target = $region20
        $region19: #{backbone_forward.1} parent=11 // pred_region
          _
        $region20: #{backbone_forward.1} parent=11 // pred_fallthru
          _
      $region12: #{backbone_forward.1} parent=5 // pred_fallthru
        _
      %p127 = scmp.lt.s32.totalorder %s12, 2
      // Predicated region
      $region21: #{backbone_forward.1} parent=5 // pred_check
        %p128 = pneg %p127
      $region22: #{backbone_forward.1} parent=5 // pred_check_branch
        %130 = sbr.rel (%p128) target = $region24
      $region23: #{backbone_forward.1} parent=5 // pred_region
        // Predicated region
        $region25: #{backbone_forward.1} parent=23 // pred_check
          %p131 = pneg %p32
        $region26: #{backbone_forward.1} parent=23 // pred_check_branch
          %133 = sbr.rel (%p131) target = $region28
        $region27: #{backbone_forward.1} parent=23 // pred_region
          %s134 = smul.u32 8, %s12
          %p135 = scmp.lt.s32.totalorder %s134, 15
          %s136 = scalar_select %p135, %s134, 15
          %s137 = smul.addr %s136, 4
          %s138 = scalar_lea.vmem %s0, %s137
          %s139 = smul.u32 8, %s12
        $region28: #{backbone_forward.1} parent=23 // pred_fallthru
          _
      $region24: #{backbone_forward.1} parent=5 // pred_fallthru
        _
      %p140 = scmp.le.s32.totalorder 1, %s12
      %p141 = scmp.lt.s32.totalorder %s12, 3
      %p142 = pnand %p140, %p141
      %p143 = pneg %p142
      // Predicated region
      $region29: #{backbone_forward.1} parent=5 // pred_check
        _
      $region30: #{backbone_forward.1} parent=5 // pred_check_branch
        %145 = sbr.rel (%p142) target = $region32
      $region31: #{backbone_forward.1} parent=5 // pred_region
        %s146 = ssub.s32 %s12, 1
        %s147 = smul.u32 8, %s17
        %p148 = scmp.lt.s32.totalorder %s147, 15
        %s149 = scalar_select %p148, %s147, 15
        %s150 = smul.addr %s149, 4
        %s151 = scalar_lea.vmem %s0, %s150
        %p152 = pneg %p38
        %p153 = pneg %p35
        %p154 = pneg %p59
        %p155 = pneg %p56
        %p156 = pneg %p80
        %p157 = pneg %p77
        %p158 = pneg %p106
        %p159 = pneg %p103
        %s160 = sand.u32 %s93, 1
        %s161 = scalar_lea.sflag [#allocation3], %s160
        %s162 = sand.u32 %s93, 1
        %s163 = smul.addr %s162, 32
        %s164 = scalar_lea.vmem [#allocation2], %s163
        %s165 = smul.u32 8, %s17
        %p166 = scmp.lt.s32.totalorder %s165, 15
        %s167 = scalar_select %p166, %s165, 15
        %s168 = smul.addr %s167, 4
        %s169 = scalar_lea.vmem %s0, %s168
        %s170 = smul.u32 8, %s17
        %s171 = smul.u32 8, %s17
        %v173 = vld [vmem:[%s169] sm:$0xf]
        %v174 = vld [vmem:[%s169 + $0x4] sm:$0xf]
        %v175 = vld [vmem:[%s169 + $0x8] sm:$0xf]
        %v176 = vld [vmem:[%s169 + $0xc] sm:$0xf]
        %v177 = vld [vmem:[%s169 + $0x10] sm:$0xf]
        %v178 = vld [vmem:[%s169 + $0x14] sm:$0xf]
        %v179 = vld [vmem:[%s169 + $0x18] sm:$0xf]
        %v180 = vld [vmem:[%s169 + $0x1c] sm:$0xf]
        %v181 = vld [vmem:[%s1] sm:$0xf]
        %v182 = vld [vmem:[%s1 + $0x4] sm:$0xf]
        %v183 = vld [vmem:[%s1 + $0x8] sm:$0xf]
        %v184 = vld [vmem:[%s1 + $0xc] sm:$0xf]
        %v185 = vld [vmem:[%s1 + $0x10] sm:$0x3]
        %v186 = vld [vmem:[%s2] sm:$0x1]
        %v188 = vlaneseq
        %v189 = vshrl.u32 %v188, 7
        %v190 = vsub.s32 0, %v189
        %v191 = vrot.slane %v186, %v190
        %v201 = vunpack.c.l.b16 %v173
        %v202 = vunpack.c.l.b16 %v174
        %v203 = vunpack.c.l.b16 %v175
        %v204 = vunpack.c.l.b16 %v176
        %v205 = vunpack.c.l.b16 %v177
        %v206 = vunpack.c.l.b16 %v178
        %v207 = vunpack.c.l.b16 %v179
        %v208 = vunpack.c.l.b16 %v180
        %v209 = vpack.c.b16 %v202, %v201
        %v210 = vpack.c.b16 %v204, %v203
        %v211 = vpack.c.b16 %v206, %v205
        %v212 = vpack.c.b16 %v208, %v207
        %v218 = vunpack.c.l.b16 %v181
        %v219 = vunpack.c.l.b16 %v182
        %v220 = vunpack.c.l.b16 %v183
        %v221 = vunpack.c.l.b16 %v184
        %v222 = vunpack.c.l.b16 %v185
        %v223 = vpack.c.b16 %v219, %v218
        %v224 = vpack.c.b16 %v221, %v220
        %v225 = vpack.c.b16 %v222, %v222
        %vm228 = vcmask 293888
        %v230 = vsel %vm228, %v209, 0
        %v233 = vsel %vm228, %v210, 0
        %v236 = vsel %vm228, %v211, 0
        %v239 = vsel %vm228, %v212, 0
        %vm241 = vcmask 1041408
        %v243 = vsel %vm241, %v225, 0
        %245 = vmatprep.subr.bf16.mxu0 0
        %246 = vmatpush1.bf16.msra.mxu0 0
        %247 = vmatprep.subr.bf16.mxu0 0
        %248 = vmatpush1.bf16.msra.mxu0 0
        %249 = vmatprep.subr.bf16.mxu0 0
        %250 = vmatpush1.bf16.msra.mxu0 0
        %251 = vmatprep.subr.bf16.mxu0 0
        %252 = vmatpush1.bf16.msra.mxu0 0
        %253 = vmatprep.subr.bf16.mxu0 0
        %254 = vmatpush1.bf16.msra.mxu0 0
        %255 = vmatprep.subr.bf16.mxu0 0
        %256 = vmatpush1.bf16.msra.mxu0 %v243
        %257 = vmatprep.subr.bf16.mxu0 0
        %258 = vmatpush1.bf16.msra.mxu0 %v224
        %259 = vmatprep.subr.bf16.mxu0 0
        %260 = vmatpush1.bf16.msra.mxu0 %v223
        %261 = vmatprep.subr.bf16.mxu0 0
        %262 = vmatpush2.bf16.msra.mxu0 0
        %263 = vmatprep.subr.bf16.mxu0 0
        %264 = vmatpush2.bf16.msra.mxu0 0
        %265 = vmatprep.subr.bf16.mxu0 0
        %266 = vmatpush2.bf16.msra.mxu0 0
        %267 = vmatprep.subr.bf16.mxu0 0
        %268 = vmatpush2.bf16.msra.mxu0 0
        %269 = vmatprep.subr.bf16.mxu0 0
        %270 = vmatpush2.bf16.msra.mxu0 0
        %271 = vmatprep.subr.bf16.mxu0 0
        %272 = vmatpush2.bf16.msra.mxu0 0
        %273 = vmatprep.subr.bf16.mxu0 0
        %274 = vmatpush2.bf16.msra.mxu0 0
        %275 = vmatprep.subr.bf16.mxu0 0
        %276 = vmatpush2.bf16.msra.mxu0 0
        %277 = vmatprep.mubr.bf16.mxu0 0
        %278 = vmatmul.mubr.bf16.gmra.mxu0 %v230
        %v279 = vpop.f32.mrf.mxu0
        %v280 = vadd.f32 %v191, %v279
        %v281 = vpop.f32.mrf.mxu0
        %v282 = vpop.f32.mrf.mxu0
        %v283 = vadd.f32 %v191, %v282
        %v284 = vpop.f32.mrf.mxu0
        %285 = vmatprep.mubr.bf16.mxu0 0
        %286 = vmatmul.mubr.bf16.gmra.mxu0 %v233
        %v287 = vpop.f32.mrf.mxu0
        %v288 = vadd.f32 %v191, %v287
        %v289 = vpop.f32.mrf.mxu0
        %v290 = vpop.f32.mrf.mxu0
        %v291 = vadd.f32 %v191, %v290
        %v292 = vpop.f32.mrf.mxu0
        %293 = vmatprep.mubr.bf16.mxu0 0
        %294 = vmatmul.mubr.bf16.gmra.mxu0 %v236
        %v295 = vpop.f32.mrf.mxu0
        %v296 = vadd.f32 %v191, %v295
        %v297 = vpop.f32.mrf.mxu0
        %v298 = vpop.f32.mrf.mxu0
        %v299 = vadd.f32 %v191, %v298
        %v300 = vpop.f32.mrf.mxu0
        %301 = vmatprep.mubr.bf16.mxu0 0
        %302 = vmatmul.mubr.bf16.gmra.mxu0 %v239
        %v303 = vpop.f32.mrf.mxu0
        %v304 = vadd.f32 %v191, %v303
        %v305 = vpop.f32.mrf.mxu0
        %v306 = vpop.f32.mrf.mxu0
        %v307 = vadd.f32 %v191, %v306
        %v308 = vpop.f32.mrf.mxu0
        %309 = vdwg.mxu0
        %v310 = vmax.f32 %v280, 0.0
        %v311 = vmax.f32 %v283, 0.0
        %v312 = vmax.f32 %v288, 0.0
        %v313 = vmax.f32 %v291, 0.0
        %v314 = vmax.f32 %v296, 0.0
        %v315 = vmax.f32 %v299, 0.0
        %v316 = vmax.f32 %v304, 0.0
        %v317 = vmax.f32 %v307, 0.0
        %v318 = vpack.c.bf16 %v311, %v310
        %v319 = vpack.c.bf16 %v313, %v312
        %v320 = vpack.c.bf16 %v315, %v314
        %v321 = vpack.c.bf16 %v317, %v316
        %v326 = vunpack.c.l.b16 %v318
        %v327 = vunpack.c.h.b16 %v318
        %v328 = vunpack.c.l.b16 %v319
        %v329 = vunpack.c.h.b16 %v319
        %v330 = vunpack.c.l.b16 %v320
        %v331 = vunpack.c.h.b16 %v320
        %v332 = vunpack.c.l.b16 %v321
        %v333 = vunpack.c.h.b16 %v321
        %v334 = vpack.c.b16 %v326, %v326
        %v335 = vpack.c.b16 %v327, %v327
        %v336 = vpack.c.b16 %v328, %v328
        %v337 = vpack.c.b16 %v329, %v329
        %v338 = vpack.c.b16 %v330, %v330
        %v339 = vpack.c.b16 %v331, %v331
        %v340 = vpack.c.b16 %v332, %v332
        %v341 = vpack.c.b16 %v333, %v333
        %350 = vst [vmem:[%s164] sm:$0xf] %v334
        %351 = vst [vmem:[%s164 + $0x4] sm:$0xf] %v335
        %352 = vst [vmem:[%s164 + $0x8] sm:$0xf] %v336
        %353 = vst [vmem:[%s164 + $0xc] sm:$0xf] %v337
        %354 = vst [vmem:[%s164 + $0x10] sm:$0xf] %v338
        %355 = vst [vmem:[%s164 + $0x14] sm:$0xf] %v339
        %356 = vst [vmem:[%s164 + $0x18] sm:$0xf] %v340
        %357 = vst [vmem:[%s164 + $0x1c] sm:$0xf] %v341
        %s358 = sand.u32 %s93, 1
        %s359 = scalar_lea.sflag [#allocation3], %s358
        %s360 = sand.u32 %s93, 1
        %s361 = smul.addr %s360, 32
        %s362 = scalar_lea.vmem [#allocation2], %s361
        // Predicated region
        $region33: #{backbone_forward.1} parent=31 // pred_check
          %p363 = pneg %p103
        $region34: #{backbone_forward.1} parent=31 // pred_check_branch
          %365 = sbr.rel (%p363) target = $region36
        $region35: #{backbone_forward.1} parent=31 // pred_region
          %s366 = smul.u32 8, %s17
          %s368 = ssub.s32 512, 512
          %369 = vsyncadd %s359, %s368
          %s370 = smul.addr %s366, 64
          %s371 = scalar_lea.hbm %s3, %s370
          %s372 = sshll.u32 %s362, 4
          %s373 = int_to_ptr.vmem [resolvable:$true] %s372
          %378 = dma.vmem_to_hbm [thread:$0]  %s373, 512, %s371, %s359, 64, 64, 4
        $region36: #{backbone_forward.1} parent=31 // pred_fallthru
          _
      $region32: #{backbone_forward.1} parent=5 // pred_fallthru
        _
      %p379 = scmp.le.s32.totalorder 2, %s12
      // Predicated region
      $region37: #{backbone_forward.1} parent=5 // pred_check
        %p380 = pneg %p379
      $region38: #{backbone_forward.1} parent=5 // pred_check_branch
        %382 = sbr.rel (%p380) target = $region40
      $region39: #{backbone_forward.1} parent=5 // pred_region
        %s383 = ssub.s32 %s12, 2
        // Predicated region
        $region41: #{backbone_forward.1} parent=39 // pred_check
          %p384 = pneg %p109
        $region42: #{backbone_forward.1} parent=39 // pred_check_branch
          %386 = sbr.rel (%p384) target = $region44
        $region43: #{backbone_forward.1} parent=39 // pred_region
          %s387 = sand.u32 %s94, 1
          %s388 = scalar_lea.sflag [#allocation3], %s387
          %s389 = sand.u32 %s94, 1
          %s390 = smul.addr %s389, 32
          %s391 = scalar_lea.vmem [#allocation2], %s390
          %392 = dma.done %s388, 512
        $region44: #{backbone_forward.1} parent=39 // pred_fallthru
          _
      $region40: #{backbone_forward.1} parent=5 // pred_fallthru
        _
    $region6: #{backbone_forward.1} parent=1 // loop_footer
      %s16 = sadd.s32 1, %s12
    $region7: #{backbone_forward.1} parent=1 // loop_footer_branch
      %11 = sbr.rel target = $region3
    $region8: #{backbone_forward.1} parent=1 // loop_exit
      _
    %393 = vsyncpa [#allocation3], 1
    %s394 = scalar_lea.sflag [#allocation3], 1
    %395 = vsyncpa %s394, 1

</llo_original>
